<compile_context>
chip_gen: v6e
topology: v6e:2x2x1
jax: 0.10.0
libtpu: 0.0.40
codegen_flags: <defaults>
</compile_context>

<pallas_src>
import functools

import jax
import jax.numpy as jnp
from jax.experimental import pallas as pl
from jax.experimental.pallas import tpu as pltpu

_LANES = 128
_SUBLANES = 8
_MAX_TILE_ROWS = 2048   # 2048x128 f32 = 1 MiB/input tile; 2 inputs x 2 bufs = 4 MiB VMEM


def _cdiv(a, b):
    return -(-a // b)


def _round_up(a, m):
    return _cdiv(a, m) * m


def _default_num_slices():
    # 2 TensorCores per chip only on v7x; single-TC chips (v5e / v6e) use one
    # slice so grid overhead and tiling granularity stay minimal.
    try:
        kind = jax.devices()[0].device_kind.lower()
    except Exception:
        return 1
    return 2 if ("v7" in kind or "7x" in kind) else 1


def _focal_loss_kernel(p_ref, t_ref, out_ref, acc_ref, *,
                       gamma, rows, steps, tile_rows, needs_mask, hard_targets):
    s_id = pl.program_id(1)

    @pl.when(s_id == 0)
    def _():
        acc_ref[...] = jnp.zeros_like(acc_ref)

    # Single cast after the (possibly sub-f32) HBM load; all math in f32.
    p = p_ref[...].astype(jnp.float32)
    t = t_ref[...].astype(jnp.float32)

    # PyTorch's binary_cross_entropy clamps each log term at -100 *before* the
    # multiply.  This ordering is what keeps 0 * (-100) = 0 (instead of
    # 0 * -inf = NaN) for p == 1 pad values / saturated probabilities.
    # Do NOT reorder the clamp and the multiply.
    log_p = jnp.maximum(jnp.log(p), -100.0)
    log_1mp = jnp.maximum(jnp.log(1.0 - p), -100.0)
    s_val = t * log_p + (1.0 - t) * log_1mp            # == -BCE
    bce = -s_val
    if hard_targets:
        # Opt-in fast path (targets known to be exactly {0,1}): one fewer EUP
        # exp per element; differs from exp(-BCE) only below e^-100.
        pt = jnp.where(t == 1.0, p, 1.0 - p)
    else:
        pt = jnp.exp(s_val)
    # alpha is folded into the wrapper's final (alpha / N) scale.
    focal = (1.0 - pt) ** gamma * bce                  # gamma: python int -> integer_pow

    def _accumulate(vals):
        # (tile_rows, 128) -> (tile_rows/8, 8, 128), summed over the major axis:
        # pure VPU adds into a single (8, 128) accumulator block.
        acc_ref[...] += vals.reshape(-1, _SUBLANES, _LANES).sum(axis=0)

    block_start = (pl.program_id(0) * steps + s_id) * tile_rows

    if needs_mask:
        # Only tail blocks pay for the mask; interior blocks take the cheap path.
        @pl.when(block_start + tile_rows <= rows)
        def _():
            _accumulate(focal)

        @pl.when(block_start + tile_rows > rows)
        def _():
            row_ids = block_start + jax.lax.broadcasted_iota(
                jnp.int32, (tile_rows, _LANES), 0)
            # where() is a select, so garbage (even NaN) in out-of-bounds rows
            # cannot leak into the sum.
            _accumulate(jnp.where(row_ids < rows, focal, 0.0))
    else:
        _accumulate(focal)

    @pl.when(s_id == steps - 1)
    def _():
        out_ref[0, :, :] = acc_ref[...]


def focal_loss(inputs, targets, alpha=1.0, gamma=2, *, hard_targets=False):
    """Focal loss over probability inputs; returns a scalar (mean reduction)."""
    assert inputs.shape == targets.shape
    total_elems = inputs.size

    p_flat = inputs.reshape(-1)
    t_flat = targets.reshape(-1)

    rows = _cdiv(total_elems, _LANES)
    rows = max(rows, _SUBLANES)  # tiny-input floor: at least one (8, 128) group

    # Pad at most to the next multiple of 128 lanes (plus the tiny-input floor).
    # Common case (N % 128 == 0): pad == 0 -> the reshape below is a pure
    # metadata bitcast, no HBM copy of inputs/targets.  Padding uses p=1, t=1,
    # which contributes exactly 0 thanks to the clamp-before-multiply above.
    pad = rows * _LANES - total_elems
    if pad:
        p_flat = jnp.pad(p_flat, (0, pad), constant_values=1)
        t_flat = jnp.pad(t_flat, (0, pad), constant_values=1)
    # No dtype cast here: stream the native dtype from HBM (bf16 callers halve traffic).
    p2d = p_flat.reshape(rows, _LANES)
    t2d = t_flat.reshape(rows, _LANES)

    num_slices = _default_num_slices()
    if rows < 2 * _SUBLANES:
        num_slices = 1

    rows_per_slice = _cdiv(rows, num_slices)
    tile_rows = min(_MAX_TILE_ROWS,
                    _round_up(rows_per_slice, _SUBLANES),
                    (rows // _SUBLANES) * _SUBLANES)   # never exceed the array
    steps = _cdiv(rows_per_slice, tile_rows)
    num_blocks = _cdiv(rows, tile_rows)
    needs_mask = (num_slices * steps * tile_rows) != rows

    def in_index_map(p, s):
        # Clamp so a (rare) fully out-of-range logical block just re-reads the
        # last valid block; its contribution is zeroed by the in-kernel row mask.
        return (jnp.minimum(p * steps + s, num_blocks - 1), 0)

    kernel = functools.partial(
        _focal_loss_kernel,
        gamma=int(gamma), rows=rows, steps=steps, tile_rows=tile_rows,
        needs_mask=needs_mask, hard_targets=bool(hard_targets),
    )

    partials = pl.pallas_call(
        kernel,
        out_shape=jax.ShapeDtypeStruct((num_slices, _SUBLANES, _LANES), jnp.float32),
        grid_spec=pltpu.PrefetchScalarGridSpec(
            num_scalar_prefetch=0,
            grid=(num_slices, steps),
            in_specs=[
                pl.BlockSpec((tile_rows, _LANES), in_index_map),
                pl.BlockSpec((tile_rows, _LANES), in_index_map),
            ],
            out_specs=pl.BlockSpec((1, _SUBLANES, _LANES), lambda p, s: (p, 0, 0)),
            scratch_shapes=[pltpu.VMEM((_SUBLANES, _LANES), jnp.float32)],
        ),
        # TODO(synk): on v7x, if a trace shows only one TensorCore active, switch the
        # slice axis to pltpu.CORE_PARALLEL (plain "parallel" is kept here for safety).
        compiler_params=pltpu.CompilerParams(
            dimension_semantics=("parallel", "arbitrary"),
        ),
    )(p2d, t2d)

    # Tiny cross-lane reduce in the wrapper; alpha and 1/N folded into one scalar.
    return jnp.sum(partials) * jnp.float32(float(alpha) / total_elems)


def focal_loss_ref(inputs, targets, alpha=1.0, gamma=2):
    p = inputs.astype(jnp.float32)
    t = targets.astype(jnp.float32)
    bce = -(t * jnp.maximum(jnp.log(p), -100.0)
            + (1.0 - t) * jnp.maximum(jnp.log(1.0 - p), -100.0))
    pt = jnp.exp(-bce)
    return jnp.mean(alpha * (1.0 - pt) ** gamma * bce)


if __name__ == "__main__":
    key = jax.random.PRNGKey(0)
    k1, k2 = jax.random.split(key)

    # Small NCHW-shaped probability inputs and binary targets.
    shape = (2, 4, 16, 16)
    logits = jax.random.normal(k1, shape, dtype=jnp.float32)
    inputs = jax.nn.sigmoid(logits)  # probabilities in (0, 1), like the module expects
    targets = (jax.random.uniform(k2, shape) > 0.5).astype(jnp.float32)

    loss = focal_loss(inputs, targets, alpha=1.0, gamma=2)
    loss = jax.block_until_ready(loss)

    ref = focal_loss_ref(inputs, targets, alpha=1.0, gamma=2)
    assert jnp.allclose(loss, ref, rtol=1e-5, atol=1e-5), (loss, ref)

    print("KERNEL_OK")
</pallas_src>

<mosaic_0001>
module attributes {stable_mosaic.version = 11 : i64} {
  func.func @_focal_loss_kernel(%arg0: i32, %arg1: i32, %arg2: memref<16x128xf32, #tpu.memory_space<vmem>>, %arg3: memref<16x128xf32, #tpu.memory_space<vmem>>, %arg4: memref<1x8x128xf32, #tpu.memory_space<vmem>>, %arg5: memref<8x128xf32, #tpu.memory_space<vmem>>) attributes {dimension_semantics = [#tpu.dimension_semantics<parallel>, #tpu.dimension_semantics<arbitrary>], iteration_bounds = array<i64: 1, 1>, scalar_prefetch = 0 : i64, scratch_operands = 1 : i64, tpu.core_type = #tpu.core_type<tc>, window_params = [{transform_indices = @transform_0, window_bounds = array<i64: 16, 128>}, {transform_indices = @transform_1, window_bounds = array<i64: 16, 128>}, {transform_indices = @transform_2, window_bounds = array<i64: 1, 8, 128>}]} {
    %c0_i32 = arith.constant 0 : i32
    %0 = arith.cmpi eq, %arg1, %c0_i32 : i32
    %1 = arith.extui %0 : i1 to i32
    %c0_i32_0 = arith.constant 0 : i32
    %2 = arith.cmpi ne, %1, %c0_i32_0 : i32
    scf.if %2 {
      %cst_16 = arith.constant 0.000000e+00 : f32
      %33 = vector.broadcast %cst_16 : f32 to vector<8x128xf32>
      %c0_17 = arith.constant 0 : index
      %c0_18 = arith.constant 0 : index
      %34 = vector.load %arg5[%c0_17, %c0_18] : memref<8x128xf32, #tpu.memory_space<vmem>>, vector<8x128xf32>
      tpu.vector_store %arg5[%c0_17, %c0_18], %33 {strides = array<i32>} : memref<8x128xf32, #tpu.memory_space<vmem>>, vector<8x128xf32>,
    } else {
    }
    %c0 = arith.constant 0 : index
    %c0_1 = arith.constant 0 : index
    %3 = vector.load %arg2[%c0, %c0_1] : memref<16x128xf32, #tpu.memory_space<vmem>>, vector<16x128xf32>
    %c0_2 = arith.constant 0 : index
    %c0_3 = arith.constant 0 : index
    %4 = vector.load %arg3[%c0_2, %c0_3] : memref<16x128xf32, #tpu.memory_space<vmem>>, vector<16x128xf32>
    %5 = math.log %3 : vector<16x128xf32>
    %cst = arith.constant -1.000000e+02 : f32
    %6 = vector.broadcast %cst : f32 to vector<16x128xf32>
    %7 = arith.maximumf %5, %6 : vector<16x128xf32>
    %cst_4 = arith.constant 1.000000e+00 : f32
    %8 = vector.broadcast %cst_4 : f32 to vector<16x128xf32>
    %9 = arith.subf %8, %3 : vector<16x128xf32>
    %10 = math.log %9 : vector<16x128xf32>
    %cst_5 = arith.constant -1.000000e+02 : f32
    %11 = vector.broadcast %cst_5 : f32 to vector<16x128xf32>
    %12 = arith.maximumf %10, %11 : vector<16x128xf32>
    %13 = arith.mulf %4, %7 : vector<16x128xf32>
    %cst_6 = arith.constant 1.000000e+00 : f32
    %14 = vector.broadcast %cst_6 : f32 to vector<16x128xf32>
    %15 = arith.subf %14, %4 : vector<16x128xf32>
    %16 = arith.mulf %15, %12 : vector<16x128xf32>
    %17 = arith.addf %13, %16 : vector<16x128xf32>
    %cst_7 = arith.constant 0.000000e+00 : f32
    %18 = vector.broadcast %cst_7 : f32 to vector<16x128xf32>
    %19 = arith.subf %18, %17 : vector<16x128xf32>
    %20 = math.exp %17 : vector<16x128xf32>
    %cst_8 = arith.constant 1.000000e+00 : f32
    %21 = vector.broadcast %cst_8 : f32 to vector<16x128xf32>
    %22 = arith.subf %21, %20 : vector<16x128xf32>
    %23 = arith.mulf %22, %22 : vector<16x128xf32>
    %24 = arith.mulf %23, %19 : vector<16x128xf32>
    %c0_9 = arith.constant 0 : index
    %c0_10 = arith.constant 0 : index
    %25 = vector.load %arg5[%c0_9, %c0_10] : memref<8x128xf32, #tpu.memory_space<vmem>>, vector<8x128xf32>
    %26 = vector.shape_cast %24 : vector<16x128xf32> to vector<2x8x128xf32>
    %cst_11 = arith.constant dense<0.000000e+00> : vector<8x128xf32>
    %27 = vector.multi_reduction <add>, %26, %cst_11 [0] : vector<2x8x128xf32> to vector<8x128xf32>
    %28 = arith.addf %25, %27 : vector<8x128xf32>
    %c0_12 = arith.constant 0 : index
    %c0_13 = arith.constant 0 : index
    %29 = vector.load %arg5[%c0_12, %c0_13] : memref<8x128xf32, #tpu.memory_space<vmem>>, vector<8x128xf32>
    tpu.vector_store %arg5[%c0_12, %c0_13], %28 {strides = array<i32>} : memref<8x128xf32, #tpu.memory_space<vmem>>, vector<8x128xf32>,
    %c0_i32_14 = arith.constant 0 : i32
    %30 = arith.cmpi eq, %arg1, %c0_i32_14 : i32
    %31 = arith.extui %30 : i1 to i32
    %c0_i32_15 = arith.constant 0 : i32
    %32 = arith.cmpi ne, %31, %c0_i32_15 : i32
    scf.if %32 {
      %c0_16 = arith.constant 0 : index
      %c0_17 = arith.constant 0 : index
      %33 = vector.load %arg5[%c0_16, %c0_17] : memref<8x128xf32, #tpu.memory_space<vmem>>, vector<8x128xf32>
      %c0_18 = arith.constant 0 : index
      %c0_19 = arith.constant 0 : index
      %c0_20 = arith.constant 0 : index
      %34 = vector.load %arg4[%c0_18, %c0_19, %c0_20] : memref<1x8x128xf32, #tpu.memory_space<vmem>>, vector<1x8x128xf32>
      %35 = vector.shape_cast %34 : vector<1x8x128xf32> to vector<8x128xf32>
      %36 = vector.shape_cast %33 : vector<8x128xf32> to vector<1x8x128xf32>
      tpu.vector_store %arg4[%c0_18, %c0_19, %c0_20], %36 {strides = array<i32>} : memref<1x8x128xf32, #tpu.memory_space<vmem>>, vector<1x8x128xf32>,
    } else {
    }
    return
  }
  func.func @transform_0(%arg0: i32, %arg1: i32) -> (i32, i32) {
    %c1_i32 = arith.constant 1 : i32
    %0 = arith.muli %arg0, %c1_i32 : i32
    %1 = arith.addi %0, %arg1 : i32
    %c0_i32 = arith.constant 0 : i32
    %2 = arith.minsi %1, %c0_i32 : i32
    %c0_i32_0 = arith.constant 0 : i32
    %c0_i32_1 = arith.constant 0 : i32
    return %2, %c0_i32_0 : i32, i32
  }
  func.func @transform_1(%arg0: i32, %arg1: i32) -> (i32, i32) {
    %c1_i32 = arith.constant 1 : i32
    %0 = arith.muli %arg0, %c1_i32 : i32
    %1 = arith.addi %0, %arg1 : i32
    %c0_i32 = arith.constant 0 : i32
    %2 = arith.minsi %1, %c0_i32 : i32
    %c0_i32_0 = arith.constant 0 : i32
    %c0_i32_1 = arith.constant 0 : i32
    return %2, %c0_i32_0 : i32, i32
  }
  func.func @transform_2(%arg0: i32, %arg1: i32) -> (i32, i32, i32) {
    %c0_i32 = arith.constant 0 : i32
    %c0_i32_0 = arith.constant 0 : i32
    %c0_i32_1 = arith.constant 0 : i32
    return %arg0, %c0_i32, %c0_i32_0 : i32, i32, i32
  }
}

</mosaic_0001>

<llo_original>
// kernel: tpu_custom_call.1
$region0: #{tpu_custom_call.1}
  #allocation0 [shape = 'u32[]', space=smem, size = 0x4, offset = 0x4, fixed_abs, tag = 'smem constant byte address 0x4 - core index']
  #allocation1 [shape = 'u32[144,128]{1,0:T(1,128)}', space=vmem, size = 0x12000, scoped, tag = 'internal scratch']
  #allocation2 [shape = 'f32[8,128]{1,0:T(8,128)}', space=vmem, size = 0x1000, scoped, tag = 'scratch operand']
  %s0 = inlined_call_operand.hbm [shape: f32[16,128], index: 0, kind: input, shape index: {}]
  %s1 = inlined_call_operand.hbm [shape: f32[16,128], index: 1, kind: input, shape index: {}]
  %s2 = inlined_call_operand.hbm [shape: f32[1,8,128], index: 2, kind: output, shape index: {}]
  %s3 = sld [smem:[#allocation0]]
  $region34: #{tpu_custom_call.1} parent=0
    _
  %s5 = ssub.s32 1, %s3
  %s6 = scalar_select 0, %s5, %s3
  $region1: #{tpu_custom_call.1} parent=0
    #allocation3 [shape = 'u8[8192]{0}', space=vmem, size = 0x2000, scoped, tag = 'input window, operand 0, single buffered']
    #allocation4 [shape = 's32[1]{0}', space=sflag, size = 0x4, scoped, tag = 'scoped memory for tpu_custom_call.1']
    #allocation5 [shape = 's32[1]{0}', space=sflag, size = 0x4, scoped, tag = 'scoped memory for tpu_custom_call.1']
    #allocation6 [shape = 'u8[8192]{0}', space=vmem, size = 0x2000, scoped, tag = 'input window, operand 1, single buffered']
    #allocation7 [shape = 's32[1]{0}', space=sflag, size = 0x4, scoped, tag = 'scoped memory for tpu_custom_call.1']
    #allocation8 [shape = 'u8[4096]{0}', space=vmem, size = 0x1000, scoped, tag = 'output window, operand 0, single buffered']
    %7 = vsyncpa [#allocation4], 0
    %8 = vsyncpa [#allocation7], 0
    %9 = vsyncpa [#allocation5], 0
    // Predicated region
    $region2: #{tpu_custom_call.1} parent=1 // pred_check
      _
    $region3: #{tpu_custom_call.1} parent=1 // pred_check_branch
      %11 = sbr.rel (0) target = $region5
    $region4: #{tpu_custom_call.1} parent=1 // pred_region
      %s12 = sadd.s32 0, 0
      %p13 = scmp.lt.s32.totalorder %s12, 0
      %s14 = scalar_select %p13, %s12, 0
      %s15 = smul.u32 2, %s14
      %s17 = ssub.s32 256, 256
      %18 = vsyncadd [#allocation4], %s17
      %s19 = smul.addr %s15, 128
      %s20 = scalar_lea.hbm %s0, %s19
      %s21 = sshll.u32 [#allocation3], 4
      %s22 = int_to_ptr.vmem [resolvable:$true] %s21
      %27 = dma.hbm_to_vmem [thread:$0]  %s20, 256, %s22, [#allocation4], 128, 128, 8
    $region5: #{tpu_custom_call.1} parent=1 // pred_fallthru
      _
    // Predicated region
    $region6: #{tpu_custom_call.1} parent=1 // pred_check
      _
    $region7: #{tpu_custom_call.1} parent=1 // pred_check_branch
      %29 = sbr.rel (0) target = $region9
    $region8: #{tpu_custom_call.1} parent=1 // pred_region
      %s30 = sadd.s32 0, 0
      %p31 = scmp.lt.s32.totalorder %s30, 0
      %s32 = scalar_select %p31, %s30, 0
      %s33 = smul.u32 2, %s32
      %s35 = ssub.s32 256, 256
      %36 = vsyncadd [#allocation7], %s35
      %s37 = smul.addr %s33, 128
      %s38 = scalar_lea.hbm %s1, %s37
      %s39 = sshll.u32 [#allocation6], 4
      %s40 = int_to_ptr.vmem [resolvable:$true] %s39
      %45 = dma.hbm_to_vmem [thread:$0]  %s38, 256, %s40, [#allocation7], 128, 128, 8
    $region9: #{tpu_custom_call.1} parent=1 // pred_fallthru
      _
    // Predicated region
    $region10: #{tpu_custom_call.1} parent=1 // pred_check
      _
    $region11: #{tpu_custom_call.1} parent=1 // pred_check_branch
      %47 = sbr.rel (0) target = $region13
    $region12: #{tpu_custom_call.1} parent=1 // pred_region
      %48 = dma.done [#allocation4], 256
    $region13: #{tpu_custom_call.1} parent=1 // pred_fallthru
      _
    // Predicated region
    $region14: #{tpu_custom_call.1} parent=1 // pred_check
      _
    $region15: #{tpu_custom_call.1} parent=1 // pred_check_branch
      %50 = sbr.rel (0) target = $region17
    $region16: #{tpu_custom_call.1} parent=1 // pred_region
      %51 = dma.done [#allocation7], 256
    $region17: #{tpu_custom_call.1} parent=1 // pred_fallthru
      _
    %s52 = sadd.s32 0, 0
    %p53 = scmp.lt.s32.totalorder %s52, 0
    %s54 = scalar_select %p53, %s52, 0
    %s55 = smul.u32 2, %s54
    %s56 = sadd.s32 0, 0
    %p57 = scmp.lt.s32.totalorder %s56, 0
    %s58 = scalar_select %p57, %s56, 0
    %s59 = smul.u32 2, %s58
    %p60 = scmp.eq.s32.totalorder 0, 0
    // Predicated region
    $region18: #{tpu_custom_call.1} parent=1 // pred_check
      %p61 = pneg %p60
    $region19: #{tpu_custom_call.1} parent=1 // pred_check_branch
      %63 = sbr.rel (%p61) target = $region21
    $region20: #{tpu_custom_call.1} parent=1 // pred_region
      %64 = vst [vmem:[#allocation2] sm:$0xff] 0.0
    $region21: #{tpu_custom_call.1} parent=1 // pred_fallthru
      _
    %v65 = vld [vmem:[#allocation3] sm:$0xff]
    %v66 = vld [vmem:[#allocation3 + $0x8] sm:$0xff]
    %v67 = vld [vmem:[#allocation6] sm:$0xff]
    %v68 = vld [vmem:[#allocation6 + $0x8] sm:$0xff]
    %v69 = vlog2.pop %v65
    %v70 = vmul.f32 %v69, 0.6931472
    %v71 = vlog2.pop %v66
    %v72 = vmul.f32 %v71, 0.6931472
    %v73 = vmax.f32 %v70, -100.0
    %v74 = vmax.f32 %v72, -100.0
    %v75 = vsub.f32 1.0, %v65
    %v76 = vsub.f32 1.0, %v66
    %v77 = vlog2.pop %v75
    %v78 = vmul.f32 %v77, 0.6931472
    %v79 = vlog2.pop %v76
    %v80 = vmul.f32 %v79, 0.6931472
    %v81 = vmax.f32 %v78, -100.0
    %v82 = vmax.f32 %v80, -100.0
    %v83 = vmul.f32 %v67, %v73
    %v84 = vmul.f32 %v68, %v74
    %v85 = vsub.f32 1.0, %v67
    %v86 = vsub.f32 1.0, %v68
    %v87 = vmul.f32 %v85, %v81
    %v88 = vmul.f32 %v86, %v82
    %v89 = vadd.f32 %v83, %v87
    %v90 = vadd.f32 %v84, %v88
    %v91 = vsub.f32 0.0, %v89
    %v92 = vsub.f32 0.0, %v90
    %v93 = vmul.f32 %v89, 1.442695
    %v94 = vpow.pop %v93
    %v95 = vmul.f32 %v90, 1.442695
    %v96 = vpow.pop %v95
    %v97 = vsub.f32 1.0, %v94
    %v98 = vsub.f32 1.0, %v96
    %v99 = vmul.f32 %v97, %v97
    %v100 = vmul.f32 %v98, %v98
    %v101 = vmul.f32 %v99, %v91
    %v102 = vmul.f32 %v100, %v92
    %v103 = vld [vmem:[#allocation2] sm:$0xff]
    %v104 = vadd.f32 %v101, %v102
    %v105 = vadd.f32 %v103, %v104
    %106 = vst [vmem:[#allocation2] sm:$0xff] %v105
    // Predicated region
    $region22: #{tpu_custom_call.1} parent=1 // pred_check
      %p107 = pneg %p60
    $region23: #{tpu_custom_call.1} parent=1 // pred_check_branch
      %109 = sbr.rel (%p107) target = $region25
    $region24: #{tpu_custom_call.1} parent=1 // pred_region
      %v110 = vld [vmem:[#allocation2] sm:$0xff]
      %111 = vst [vmem:[#allocation8] sm:$0xff] %v110
    $region25: #{tpu_custom_call.1} parent=1 // pred_fallthru
      _
    // Predicated region
    $region26: #{tpu_custom_call.1} parent=1 // pred_check
      _
    $region27: #{tpu_custom_call.1} parent=1 // pred_check_branch
      %113 = sbr.rel (0) target = $region29
    $region28: #{tpu_custom_call.1} parent=1 // pred_region
      %s115 = ssub.s32 128, 128
      %116 = vsyncadd [#allocation5], %s115
      %s118 = sshll.u32 [#allocation8], 4
      %s119 = int_to_ptr.vmem [resolvable:$true] %s118
      %121 = dma.vmem_to_hbm [thread:$0]  %s119, 128, %s2, [#allocation5]
    $region29: #{tpu_custom_call.1} parent=1 // pred_fallthru
      _
    // Predicated region
    $region30: #{tpu_custom_call.1} parent=1 // pred_check
      _
    $region31: #{tpu_custom_call.1} parent=1 // pred_check_branch
      %123 = sbr.rel (0) target = $region33
    $region32: #{tpu_custom_call.1} parent=1 // pred_region
      %124 = dma.done [#allocation5], 128
    $region33: #{tpu_custom_call.1} parent=1 // pred_fallthru
      _
    %125 = vsyncpa [#allocation4], 1
    %126 = vsyncpa [#allocation7], 1
    %127 = vsyncpa [#allocation5], 1

</llo_original>
